<compile_context>
chip_gen: v5e
topology: v5e:2x2
jax: 0.10.0
libtpu: 0.0.40
codegen_flags: <defaults>
</compile_context>

<pallas_src>
import functools

import jax
import jax.numpy as jnp
from jax.experimental import pallas as pl
from jax.experimental.pallas import tpu as pltpu


def _rup(x, m):
    return (x + m - 1) // m * m


def _pair(v):
    return (v, v) if isinstance(v, int) else tuple(v)


# ----------------------------------------------------------------------------
# Pallas kernels
# ----------------------------------------------------------------------------

def _mm_kernel(x_ref, w_ref, b_ref, *rest, relu, has_residual):
    """out = [relu]((x @ w_scaled) + shift [+ residual]).

    x/w are bf16 tiles (BN scale pre-folded into w); the MXU accumulates in
    f32 and the epilogue (shift, optional residual add, optional ReLU) runs in
    f32 before the bf16 store.  K is a single block (tk == Kp).
    """
    if has_residual:
        r_ref, o_ref = rest
    else:
        (o_ref,) = rest
    acc = jnp.dot(x_ref[...], w_ref[...], preferred_element_type=jnp.float32)
    y = acc + b_ref[...]
    if has_residual:
        y = y + r_ref[...].astype(jnp.float32)
    if relu:
        y = jnp.maximum(y, 0.0)
    o_ref[...] = y.astype(o_ref.dtype)


def _maxpool_kernel(p_ref, o_ref):
    # p_ref: (k*k, TM, Cp) window positions; max-reduce over positions.
    o_ref[...] = jnp.max(p_ref[...], axis=0)


# ----------------------------------------------------------------------------
# Tiling heuristics
# ----------------------------------------------------------------------------

_SPLIT_WEIGHT_BYTES = 1 << 20          # split N only when weight DMA dominates


def _pick_tm(M):
    if M >= 2048:
        return 512                      # stem layers: big tiles for HBM roofline
    if M >= 1024:
        return 256
    return _rup(M, 8)                   # single full block for small-M layers


def _choose_np_tn(cout, Kp):
    """Padded output-channel count and N-tile.

    Np is lane-padded; for layers with a collapsed M grid and >=1 MiB of
    weights we split N into 2-4 tiles so v7x's two TensorCores both get work
    (and the second tile's weight DMA overlaps the first tile's compute)
    while tiny layers stay single-step to avoid per-step overhead on v5e/v6e.
    """
    Np = _rup(cout, 128)
    tn = Np
    if Np >= 256 and Kp * Np * 2 >= _SPLIT_WEIGHT_BYTES:
        best = None
        for steps in (2, 3, 4):
            if Np % steps == 0 and (Np // steps) % 128 == 0:
                best = Np // steps
                break
        if best is None:                # e.g. 2176 = 17*128: re-pad to split
            Np = _rup(cout, 256)
            best = Np // 2
        tn = best
    return Np, tn


# ----------------------------------------------------------------------------
# Fused conv (+folded BN) (+residual) (+ReLU) via im2col + one Pallas matmul
# ----------------------------------------------------------------------------

def _im2col(x, kh, kw, stride, padding):
    sh, sw = stride
    ph, pw = padding
    if ph or pw:
        x = jnp.pad(x, ((0, 0), (ph, ph), (pw, pw), (0, 0)))
    n, h, w, c = x.shape
    oh = (h - kh) // sh + 1
    ow = (w - kw) // sw + 1
    cols = []
    for i in range(kh):
        for j in range(kw):
            cols.append(x[:, i:i + sh * (oh - 1) + 1:sh,
                           j:j + sw * (ow - 1) + 1:sw, :])
    patches = jnp.concatenate(cols, axis=-1)          # (n, oh, ow, kh*kw*c)
    return patches.reshape(n * oh * ow, kh * kw * c), (n, oh, ow)


@functools.partial(
    jax.jit,
    static_argnames=("kh", "kw", "stride", "padding", "cout", "relu", "tn"))
def _conv_bn_act(x, w, shift, residual, *, kh, kw, stride, padding, cout,
                 relu, tn):
    """conv (+ folded BN) (+ residual add) (+ ReLU) as ONE Pallas matmul."""
    if (kh, kw) == (1, 1) and stride == (1, 1) and padding == (0, 0):
        n, oh, ow, c = x.shape
        patches = x.reshape(n * oh * ow, c)           # 1x1: pure reshape
    else:
        patches, (n, oh, ow) = _im2col(x, kh, kw, stride, padding)
    M, K = patches.shape
    Kp, Np = w.shape                    # weights pre-padded to 128 multiples

    tm = _pick_tm(M)
    Mp = _rup(M, tm)
    patches = patches.astype(jnp.bfloat16)
    if Mp > M or Kp > K:
        patches = jnp.pad(patches, ((0, Mp - M), (0, Kp - K)))

    grid_m = Mp // tm
    # Large-M (stem) layers get dual-TC parallelism from the M axis already;
    # keep N lane-dense there.  Small-M layers use the pre-computed N split.
    tn_use = Np if grid_m >= 2 else tn

    operands = [patches, w, shift]
    in_specs = [
        pl.BlockSpec((tm, Kp), lambda i, j: (i, 0)),
        pl.BlockSpec((Kp, tn_use), lambda i, j: (0, j)),
        pl.BlockSpec((1, tn_use), lambda i, j: (0, j)),
    ]
    has_res = residual is not None
    if has_res:
        r2 = residual.reshape(M, -1).astype(jnp.bfloat16)
        if Mp > M or Np > r2.shape[1]:
            r2 = jnp.pad(r2, ((0, Mp - M), (0, Np - r2.shape[1])))
        operands.append(r2)
        in_specs.append(pl.BlockSpec((tm, tn_use), lambda i, j: (i, j)))

    out = pl.pallas_call(
        functools.partial(_mm_kernel, relu=relu, has_residual=has_res),
        out_shape=jax.ShapeDtypeStruct((Mp, Np), jnp.bfloat16),
        grid_spec=pltpu.PrefetchScalarGridSpec(
            num_scalar_prefetch=0,
            grid=(grid_m, Np // tn_use),
            in_specs=in_specs,
            out_specs=pl.BlockSpec((tm, tn_use), lambda i, j: (i, j)),
        ),
        compiler_params=pltpu.CompilerParams(
            dimension_semantics=("parallel", "parallel"),
            # Worst-case tile set here is a few MiB double-buffered: safe on
            # v5e/v6e (128 MiB) and v7x (64 MiB) VMEM.
            vmem_limit_bytes=32 * 1024 * 1024,
        ),
    )(*operands)
    if Mp > M or Np > cout:
        out = out[:M, :cout]
    return out.reshape(n, oh, ow, cout)


def apply_conv(x, p, residual=None, relu=None):
    relu_flag = p["relu"] if relu is None else relu
    return _conv_bn_act(x, p["w"], p["shift"], residual,
                        kh=p["kh"], kw=p["kw"], stride=p["stride"],
                        padding=p["pad"], cout=p["cout"], relu=relu_flag,
                        tn=p["tn"])


def seq(x, plist):
    for p in plist:
        x = apply_conv(x, p)
    return x


# ----------------------------------------------------------------------------
# MaxPool kernel (bf16; small tensors -> usually a single block)
# ----------------------------------------------------------------------------

@functools.partial(jax.jit, static_argnames=("k", "s"))
def maxpool2d(x, *, k=3, s=2):
    n, h, w, c = x.shape
    oh = (h - k) // s + 1
    ow = (w - k) // s + 1
    cols = [x[:, i:i + s * (oh - 1) + 1:s, j:j + s * (ow - 1) + 1:s, :]
            for i in range(k) for j in range(k)]
    patches = jnp.stack(cols, axis=0).reshape(k * k, n * oh * ow, c)
    M, C = n * oh * ow, c
    Cp = _rup(C, 128)
    itemsize = jnp.dtype(x.dtype).itemsize
    rows_budget = (4 * 1024 * 1024 // itemsize) // (k * k * Cp)
    tm = min(_rup(M, 8), max(8, (rows_budget // 8) * 8))
    Mp = _rup(M, tm)
    pp = jnp.pad(patches, ((0, 0), (0, Mp - M), (0, Cp - C)))
    out = pl.pallas_call(
        _maxpool_kernel,
        out_shape=jax.ShapeDtypeStruct((Mp, Cp), x.dtype),
        grid=(Mp // tm,),
        in_specs=[pl.BlockSpec((k * k, tm, Cp), lambda i: (0, i, 0))],
        out_specs=pl.BlockSpec((tm, Cp), lambda i: (i, 0)),
    )(pp)
    return out[:M, :C].reshape(n, oh, ow, c)


# ----------------------------------------------------------------------------
# Deterministic parameter construction (synthetic, mirrors __init__ shapes).
# BN scale is folded into the weights, which are reshaped to (Kp, Np), padded
# to 128 multiples and cast to bf16 at pack time; sibling 1x1 convs feeding
# the same input are fused (concatenated along cout) before packing.
# ----------------------------------------------------------------------------

class _Keys:
    def __init__(self, seed):
        self._key = jax.random.PRNGKey(seed)

    def __call__(self):
        self._key, sub = jax.random.split(self._key)
        return sub


def _raw_conv_block(kg, cin, cout, ksize, stride=1, padding=0):
    """nn.Conv2d + nn.BatchNorm2d (running stats) + nn.ReLU, unpacked."""
    kh, kw = _pair(ksize)
    fan_in = kh * kw * cin
    w = jax.random.normal(kg(), (kh, kw, cin, cout), jnp.float32) \
        * jnp.sqrt(2.0 / fan_in)
    b = 0.01 * jax.random.normal(kg(), (cout,), jnp.float32)
    gamma = 1.0 + 0.01 * jax.random.normal(kg(), (cout,), jnp.float32)
    beta = 0.01 * jax.random.normal(kg(), (cout,), jnp.float32)
    rmean = jnp.zeros((cout,), jnp.float32)
    rvar = jnp.ones((cout,), jnp.float32)
    scale = gamma / jnp.sqrt(rvar + 1e-5)              # folded BN (inference)
    shift = (b - rmean) * scale + beta
    return {"w": w, "scale": scale, "shift": shift, "kh": kh, "kw": kw,
            "stride": _pair(stride), "pad": _pair(padding), "relu": True}


def _raw_conv(kg, cin, cout, ksize, stride=1, padding=0):
    """Plain nn.Conv2d (no BN, no ReLU) — the conv_linear layers."""
    kh, kw = _pair(ksize)
    fan_in = kh * kw * cin
    w = jax.random.normal(kg(), (kh, kw, cin, cout), jnp.float32) \
        * jnp.sqrt(1.0 / fan_in)
    b = 0.01 * jax.random.normal(kg(), (cout,), jnp.float32)
    return {"w": w, "scale": jnp.ones((cout,), jnp.float32), "shift": b,
            "kh": kh, "kw": kw, "stride": _pair(stride), "pad": _pair(padding),
            "relu": False}


def _fuse(raws):
    """Fuse sibling convs (same input / geometry) by concatenating along N."""
    base = raws[0]
    return dict(base,
                w=jnp.concatenate([r["w"] for r in raws], axis=-1),
                scale=jnp.concatenate([r["scale"] for r in raws]),
                shift=jnp.concatenate([r["shift"] for r in raws]))


def _pack(raw):
    kh, kw = raw["kh"], raw["kw"]
    cin, cout = raw["w"].shape[2], raw["w"].shape[3]
    K = kh * kw * cin
    Kp = _rup(K, 128)
    Np, tn = _choose_np_tn(cout, Kp)
    wf = (raw["w"] * raw["scale"]).reshape(K, cout)    # fold BN scale into w
    w2 = jnp.pad(wf, ((0, Kp - K), (0, Np - cout))).astype(jnp.bfloat16)
    b2 = jnp.pad(raw["shift"].reshape(1, cout), ((0, 0), (0, Np - cout)))
    return {"w": w2, "shift": b2, "kh": kh, "kw": kw, "cout": cout,
            "stride": raw["stride"], "pad": raw["pad"], "relu": raw["relu"],
            "tn": tn}


def stem_params(kg):
    br1_head = _raw_conv_block(kg, 160, 64, 1, 1, 0)
    br1_rest = [_raw_conv_block(kg, 64, 96, 3, 1, 0)]
    br2_head = _raw_conv_block(kg, 160, 64, 1, 1, 0)
    br2_rest = [_raw_conv_block(kg, 64, 64, (7, 1), 1, (3, 0)),
                _raw_conv_block(kg, 64, 64, (1, 7), 1, (0, 3)),
                _raw_conv_block(kg, 64, 96, 3, 1, 0)]
    return {
        "conv1": _pack(_raw_conv_block(kg, 3, 32, 3, 2, 0)),
        "conv2": _pack(_raw_conv_block(kg, 32, 32, 3, 1, 0)),
        "conv3": _pack(_raw_conv_block(kg, 32, 64, 3, 1, 1)),
        "conv4": _pack(_raw_conv_block(kg, 64, 96, 3, 2, 0)),
        "br_head": _pack(_fuse([br1_head, br2_head])),     # 64 | 64
        "br1_rest": [_pack(r) for r in br1_rest],
        "br2_rest": [_pack(r) for r in br2_rest],
        "conv5": _pack(_raw_conv_block(kg, 192, 192, 3, 2, 0)),
    }


def inception_a_params(kg, cin=384):
    b1 = _raw_conv_block(kg, cin, 32, 1, 1, 0)
    b2h = _raw_conv_block(kg, cin, 32, 1, 1, 0)
    b2r = [_raw_conv_block(kg, 32, 32, 3, 1, 1)]
    b3h = _raw_conv_block(kg, cin, 48, 1, 1, 0)
    b3r = [_raw_conv_block(kg, 48, 48, 3, 1, 1)]
    # NB: reference b3 is 1x1->32, 3x3->48, 3x3->64; keep exact channel plan.
    b3h = _raw_conv_block(kg, cin, 32, 1, 1, 0)
    b3r = [_raw_conv_block(kg, 32, 48, 3, 1, 1),
           _raw_conv_block(kg, 48, 64, 3, 1, 1)]
    return {
        "head": _pack(_fuse([b1, b2h, b3h])),               # 32 | 32 | 48
        "b2": [_pack(r) for r in b2r],
        "b3": [_pack(r) for r in b3r],
        "lin": _pack(_raw_conv(kg, 128, 384, 1, 1, 0)),
    }


def inception_a_red_params(kg, cin=384):
    return {
        "conv": _pack(_raw_conv_block(kg, cin, 384, 3, 2, 0)),
        "br": [_pack(_raw_conv_block(kg, cin, 256, 1, 1, 0)),
               _pack(_raw_conv_block(kg, 256, 256, 3, 1, 1)),
               _pack(_raw_conv_block(kg, 256, 384, 3, 2, 0))],
    }


def inception_b_params(kg, cin=1152):
    c1 = _raw_conv_block(kg, cin, 192, 1, 1, 0)
    brh = _raw_conv_block(kg, cin, 128, 1, 1, 0)
    brr = [_raw_conv_block(kg, 128, 160, (1, 7), 1, (0, 3)),
           _raw_conv_block(kg, 160, 192, (7, 1), 1, (3, 0))]
    return {
        "head": _pack(_fuse([c1, brh])),                    # 192 | 128
        "br": [_pack(r) for r in brr],
        "lin": _pack(_raw_conv(kg, 384, cin, 1, 1, 0)),
    }


def inception_b_red_params(kg, cin=1152):
    h1 = _raw_conv_block(kg, cin, 256, 1, 1, 0)
    h2 = _raw_conv_block(kg, cin, 256, 1, 1, 0)
    h3 = _raw_conv_block(kg, cin, 256, 1, 1, 0)
    return {
        "head": _pack(_fuse([h1, h2, h3])),                 # 256 | 256 | 256
        "b1": [_pack(_raw_conv_block(kg, 256, 384, 3, 2, 0))],
        "b2": [_pack(_raw_conv_block(kg, 256, 288, 3, 2, 0))],
        "b3": [_pack(_raw_conv_block(kg, 256, 288, 3, 1, 1)),
               _pack(_raw_conv_block(kg, 288, 320, 3, 2, 0))],
    }


def inception_c_params(kg, cin=2144):
    c1 = _raw_conv_block(kg, cin, 192, 1, 1, 0)
    brh = _raw_conv_block(kg, cin, 192, 1, 1, 0)
    brr = [_raw_conv_block(kg, 192, 224, (1, 3), 1, (0, 1)),
           _raw_conv_block(kg, 224, 256, (3, 1), 1, (1, 0))]
    return {
        "head": _pack(_fuse([c1, brh])),                    # 192 | 192
        "br": [_pack(r) for r in brr],
        "lin": _pack(_raw_conv(kg, 448, cin, 1, 1, 0)),
    }


def inception_resnet_v2_params(seed=0, num_classes=10):
    kg = _Keys(seed)
    return {
        "stem": stem_params(kg),
        "A": [inception_a_params(kg) for _ in range(5)],
        "A_red": inception_a_red_params(kg),
        "B": [inception_b_params(kg) for _ in range(10)],
        "B_red": inception_b_red_params(kg),
        "C": [inception_c_params(kg) for _ in range(5)],
        "fc_w": 0.02 * jax.random.normal(kg(), (2144, num_classes), jnp.float32),
        "fc_b": 0.01 * jax.random.normal(kg(), (num_classes,), jnp.float32),
    }


# ----------------------------------------------------------------------------
# Module forwards
# ----------------------------------------------------------------------------

def stem_forward(x, p):
    x = apply_conv(x, p["conv1"])
    x = apply_conv(x, p["conv2"])
    x = apply_conv(x, p["conv3"])
    x = jnp.concatenate([maxpool2d(x), apply_conv(x, p["conv4"])], axis=-1)
    h = apply_conv(x, p["br_head"])                 # fused branch-head 1x1s
    x1 = seq(h[..., :64], p["br1_rest"])
    x2 = seq(h[..., 64:128], p["br2_rest"])
    x = jnp.concatenate([x1, x2], axis=-1)
    return jnp.concatenate([maxpool2d(x), apply_conv(x, p["conv5"])], axis=-1)


def inception_a_forward(x, p, fuse_relu):
    # `x` is already ReLU'd (previous block's fused epilogue, or the stem
    # output which is non-negative by construction); it is also the residual.
    h = apply_conv(x, p["head"])                    # 32 | 32 | 48
    x1 = h[..., :32]
    x2 = seq(h[..., 32:64], p["b2"])
    x3 = seq(h[..., 64:112], p["b3"])
    y = jnp.concatenate([x1, x2, x3], axis=-1)
    # conv_linear + residual add (+ the next op's leading ReLU) fused.
    return apply_conv(y, p["lin"], residual=x, relu=fuse_relu)


def inception_a_red_forward(x, p):
    x1 = maxpool2d(x)
    x2 = apply_conv(x, p["conv"])
    x3 = seq(x, p["br"])
    return jnp.concatenate([x1, x2, x3], axis=-1)


def inception_b_forward(x, p, fuse_relu):
    h = apply_conv(x, p["head"])                    # 192 | 128
    x1 = h[..., :192]
    x2 = seq(h[..., 192:320], p["br"])
    y = jnp.concatenate([x1, x2], axis=-1)
    return apply_conv(y, p["lin"], residual=x, relu=fuse_relu)


def inception_b_red_forward(x, p):
    x1 = maxpool2d(x)
    h = apply_conv(x, p["head"])                    # 256 | 256 | 256
    x2 = seq(h[..., :256], p["b1"])
    x3 = seq(h[..., 256:512], p["b2"])
    x4 = seq(h[..., 512:768], p["b3"])
    return jnp.concatenate([x1, x2, x3, x4], axis=-1)


def inception_c_forward(x, p, fuse_relu):
    h = apply_conv(x, p["head"])                    # 192 | 192
    x1 = h[..., :192]
    x2 = seq(h[..., 192:384], p["br"])
    y = jnp.concatenate([x1, x2], axis=-1)
    return apply_conv(y, p["lin"], residual=x, relu=fuse_relu)


def inception_resnet_v2_forward(x_nchw, params):
    # NCHW (PyTorch) -> NHWC bf16 (kernel layout / activation dtype).
    x = jnp.transpose(x_nchw, (0, 2, 3, 1)).astype(jnp.bfloat16)
    x = stem_forward(x, params["stem"])

    # F.relu at the top of InceptionA[0] is the identity: the stem output is a
    # concat of post-ReLU conv outputs and a maxpool of non-negative data.
    for p in params["A"]:
        # Fused epilogue ReLU == the next InceptionA's leading F.relu; for the
        # last block it is the outer F.relu before InceptionA_red.
        x = inception_a_forward(x, p, fuse_relu=True)
    x = inception_a_red_forward(x, params["A_red"])

    # F.relu at the top of InceptionB[0]: identity (A_red output >= 0).
    for p in params["B"]:
        x = inception_b_forward(x, p, fuse_relu=True)
    x = inception_b_red_forward(x, params["B_red"])

    # F.relu at the top of InceptionC[0]: identity (B_red output >= 0).
    n_c = len(params["C"])
    for i, p in enumerate(params["C"]):
        # The last InceptionC output goes straight to avg-pool: no ReLU.
        x = inception_c_forward(x, p, fuse_relu=(i < n_c - 1))

    x = jnp.mean(x.astype(jnp.float32), axis=(1, 2))   # AdaptiveAvgPool2d + flatten
    # nn.Linear(2144, num_classes): tiny (2x2144 @ 2144x10) -> plain dot.
    x = x @ params["fc_w"] + params["fc_b"]
    # nn.Dropout(p=0.2): identity at inference.
    return x


if __name__ == "__main__":
    key = jax.random.PRNGKey(0)
    # 75x75 is the smallest spatial size that survives the stem + the two
    # reduction stages of this architecture (batch kept small at 2).
    x = jax.random.normal(key, (2, 3, 75, 75), jnp.float32)
    params = inception_resnet_v2_params(seed=0, num_classes=10)
    out = inception_resnet_v2_forward(x, params)
    out = jax.block_until_ready(out)
    assert out.shape == (2, 10) and out.dtype == jnp.float32
    print("KERNEL_OK")
</pallas_src>

<mosaic_0001>
module attributes {stable_mosaic.version = 11 : i64} {
  func.func @_mm_kernel(%arg0: i32, %arg1: i32, %arg2: memref<512x128xbf16, #tpu.memory_space<vmem>>, %arg3: memref<128x128xbf16, #tpu.memory_space<vmem>>, %arg4: memref<1x128xf32, #tpu.memory_space<vmem>>, %arg5: memref<512x128xbf16, #tpu.memory_space<vmem>>) attributes {dimension_semantics = [#tpu.dimension_semantics<parallel>, #tpu.dimension_semantics<parallel>], iteration_bounds = array<i64: 6, 1>, scalar_prefetch = 0 : i64, scratch_operands = 0 : i64, tpu.core_type = #tpu.core_type<tc>, window_params = [{transform_indices = @transform_0, window_bounds = array<i64: 512, 128>}, {transform_indices = @transform_1, window_bounds = array<i64: 128, 128>}, {transform_indices = @transform_2, window_bounds = array<i64: 1, 128>}, {transform_indices = @transform_3, window_bounds = array<i64: 512, 128>}]} {
    %c0 = arith.constant 0 : index
    %c0_0 = arith.constant 0 : index
    %0 = vector.load %arg2[%c0, %c0_0] : memref<512x128xbf16, #tpu.memory_space<vmem>>, vector<512x128xbf16>
    %c0_1 = arith.constant 0 : index
    %c0_2 = arith.constant 0 : index
    %1 = vector.load %arg3[%c0_1, %c0_2] : memref<128x128xbf16, #tpu.memory_space<vmem>>, vector<128x128xbf16>
    %cst = arith.constant dense<0.000000e+00> : vector<512x128xf32>
    %2 = tpu.matmul %0, %1, %cst {dimension_numbers = #tpu.dot_dimension_numbers<[1], [0], [0], [1], [0, 0, 1, 1], [], []>} : vector<512x128xbf16>, vector<128x128xbf16>, vector<512x128xf32> -> vector<512x128xf32>
    %c0_3 = arith.constant 0 : index
    %c0_4 = arith.constant 0 : index
    %3 = vector.load %arg4[%c0_3, %c0_4] : memref<1x128xf32, #tpu.memory_space<vmem>>, vector<1x128xf32>
    %4 = vector.broadcast %3 : vector<1x128xf32> to vector<512x128xf32>
    %5 = arith.addf %2, %4 : vector<512x128xf32>
    %cst_5 = arith.constant 0.000000e+00 : f32
    %6 = vector.broadcast %cst_5 : f32 to vector<512x128xf32>
    %7 = arith.maximumf %5, %6 : vector<512x128xf32>
    %8 = arith.truncf %7 : vector<512x128xf32> to vector<512x128xbf16>
    %c0_6 = arith.constant 0 : index
    %c0_7 = arith.constant 0 : index
    %9 = vector.load %arg5[%c0_6, %c0_7] : memref<512x128xbf16, #tpu.memory_space<vmem>>, vector<512x128xbf16>
    tpu.vector_store %arg5[%c0_6, %c0_7], %8 {strides = array<i32>} : memref<512x128xbf16, #tpu.memory_space<vmem>>, vector<512x128xbf16>,
    return
  }
  func.func @transform_0(%arg0: i32, %arg1: i32) -> (i32, i32) {
    %c0_i32 = arith.constant 0 : i32
    %c0_i32_0 = arith.constant 0 : i32
    return %arg0, %c0_i32 : i32, i32
  }
  func.func @transform_1(%arg0: i32, %arg1: i32) -> (i32, i32) {
    %c0_i32 = arith.constant 0 : i32
    %c0_i32_0 = arith.constant 0 : i32
    return %c0_i32, %arg1 : i32, i32
  }
  func.func @transform_2(%arg0: i32, %arg1: i32) -> (i32, i32) {
    %c0_i32 = arith.constant 0 : i32
    %c0_i32_0 = arith.constant 0 : i32
    return %c0_i32, %arg1 : i32, i32
  }
  func.func @transform_3(%arg0: i32, %arg1: i32) -> (i32, i32) {
    %c0_i32 = arith.constant 0 : i32
    return %arg0, %arg1 : i32, i32
  }
}

</mosaic_0001>

<llo_original>
// kernel: _conv_bn_act.1
$region0: #{_conv_bn_act.1}
  #allocation0 [shape = 'u32[]', space=smem, size = 0x4, offset = 0x4, fixed_abs, tag = 'smem constant byte address 0x4 - core index']
  #allocation1 [shape = 'u32[72,128]{1,0:T(1,128)}', space=vmem, size = 0x9000, scoped, tag = 'internal scratch']
  %s0 = inlined_call_operand.vmem [shape: bf16[3072,128], index: 0, kind: input, shape index: {}]
  %s1 = inlined_call_operand.vmem [shape: bf16[128,128], index: 1, kind: input, shape index: {}]
  %s2 = inlined_call_operand.vmem [shape: f32[1,128], index: 2, kind: input, shape index: {}]
  %s3 = inlined_call_operand.vmem [shape: bf16[3072,128], index: 3, kind: output, shape index: {}]
  %s4 = sld [smem:[#allocation0]]
  $region45: #{_conv_bn_act.1} parent=0
    _
  %s6 = ssub.s32 1, %s4
  %s7 = scalar_select 0, %s6, %s4
  loop: start=0, step=1, limit=8
  $region2: #{_conv_bn_act.1} parent=0 // loop_pre_header
    _
  $region3: #{_conv_bn_act.1} parent=0 // loop_header
    %s9 = sphi 0, %s13
    %p10 = scmp.ge.s32.totalorder %s9, 8
    %s16 = sphi 0, %s28
    %s17 = sphi 0, %s24
    %s18 = sphi 0, %s16
    %s19 = sphi 0, %s17
    %s20 = sphi 0, %s18
    %s21 = sphi 0, %s19
    %s31 = sphi 0, %s33
    %s34 = sphi 0, %s31
    %s35 = sphi 0, %s34
    %s51 = sphi 0, %s35
    %s57 = sphi 0, %s59
    %s60 = sphi 0, %s57
    %s61 = sphi 0, %s60
    %s77 = sphi 0, %s61
    %s83 = sphi 0, %s85
    %s86 = sphi 0, %s83
    %s87 = sphi 0, %s86
    %s103 = sphi 0, %s87
    %s111 = sphi 0, %s113
    %s114 = sphi 0, %s111
    %s115 = sphi 0, %s114
    %s131 = sphi 0, %s115
  $region4: #{_conv_bn_act.1} parent=0 // loop_header_branch
    %12 = sbr.rel (%p10) target = $region8
  $region5: #{_conv_bn_act.1} parent=0 // loop_body
    %s14 = ssub.s32 %s9, 1
    %s15 = ssub.s32 %s9, 2
    %s22 = sadd.s32 1, %s17
    %p23 = scmp.ge.s32.totalorder %s22, 1
    %s24 = scalar_select %p23, 0, %s22
    %s25 = sadd.s32 1, %s16
    %s26 = scalar_select %p23, %s25, %s16
    %p27 = scmp.ge.s32.totalorder %s26, 6
    %s28 = scalar_select %p27, 0, %s26
    %s29 = ssub.s32 %s16, %s28
    %p30 = scmp.eq.s32.totalorder %s29, 0
    %s32 = sadd.s32 %s31, 1
    %s33 = scalar_select %p30, %s31, %s32
    %p36 = pneg %p30
    %p37 = scmp.eq.s32.totalorder %s9, 5
    %p38 = por %p36, %p37
    %p39 = scmp.ne.s32.totalorder %s31, %s34
    %p40 = scmp.eq.s32.totalorder %s9, 0
    %p41 = por %p39, %p40
    %p42 = scmp.ne.s32.totalorder %s31, %s34
    %p43 = scmp.eq.s32.totalorder %s14, 5
    %p44 = por %p42, %p43
    %p45 = scmp.ne.s32.totalorder %s34, %s35
    %p46 = scmp.eq.s32.totalorder %s14, 0
    %p47 = por %p45, %p46
    %p48 = scmp.ne.s32.totalorder %s34, %s35
    %p49 = scmp.eq.s32.totalorder %s15, 5
    %p50 = por %p48, %p49
    %p52 = scmp.ne.s32.totalorder %s35, %s51
    %p53 = scmp.eq.s32.totalorder %s15, 0
    %p54 = por %p52, %p53
    %s55 = ssub.s32 %s17, %s24
    %p56 = scmp.eq.s32.totalorder %s55, 0
    %s58 = sadd.s32 %s57, 1
    %s59 = scalar_select %p56, %s57, %s58
    %p62 = pneg %p56
    %p63 = scmp.eq.s32.totalorder %s9, 5
    %p64 = por %p62, %p63
    %p65 = scmp.ne.s32.totalorder %s57, %s60
    %p66 = scmp.eq.s32.totalorder %s9, 0
    %p67 = por %p65, %p66
    %p68 = scmp.ne.s32.totalorder %s57, %s60
    %p69 = scmp.eq.s32.totalorder %s14, 5
    %p70 = por %p68, %p69
    %p71 = scmp.ne.s32.totalorder %s60, %s61
    %p72 = scmp.eq.s32.totalorder %s14, 0
    %p73 = por %p71, %p72
    %p74 = scmp.ne.s32.totalorder %s60, %s61
    %p75 = scmp.eq.s32.totalorder %s15, 5
    %p76 = por %p74, %p75
    %p78 = scmp.ne.s32.totalorder %s61, %s77
    %p79 = scmp.eq.s32.totalorder %s15, 0
    %p80 = por %p78, %p79
    %s81 = ssub.s32 %s17, %s24
    %p82 = scmp.eq.s32.totalorder %s81, 0
    %s84 = sadd.s32 %s83, 1
    %s85 = scalar_select %p82, %s83, %s84
    %p88 = pneg %p82
    %p89 = scmp.eq.s32.totalorder %s9, 5
    %p90 = por %p88, %p89
    %p91 = scmp.ne.s32.totalorder %s83, %s86
    %p92 = scmp.eq.s32.totalorder %s9, 0
    %p93 = por %p91, %p92
    %p94 = scmp.ne.s32.totalorder %s83, %s86
    %p95 = scmp.eq.s32.totalorder %s14, 5
    %p96 = por %p94, %p95
    %p97 = scmp.ne.s32.totalorder %s86, %s87
    %p98 = scmp.eq.s32.totalorder %s14, 0
    %p99 = por %p97, %p98
    %p100 = scmp.ne.s32.totalorder %s86, %s87
    %p101 = scmp.eq.s32.totalorder %s15, 5
    %p102 = por %p100, %p101
    %p104 = scmp.ne.s32.totalorder %s87, %s103
    %p105 = scmp.eq.s32.totalorder %s15, 0
    %p106 = por %p104, %p105
    %s107 = ssub.s32 %s16, %s28
    %s108 = ssub.s32 %s17, %s24
    %s109 = sor.u32 %s107, %s108
    %p110 = scmp.eq.s32.totalorder %s109, 0
    %s112 = sadd.s32 %s111, 1
    %s113 = scalar_select %p110, %s111, %s112
    %p116 = pneg %p110
    %p117 = scmp.eq.s32.totalorder %s9, 5
    %p118 = por %p116, %p117
    %p119 = scmp.ne.s32.totalorder %s111, %s114
    %p120 = scmp.eq.s32.totalorder %s9, 0
    %p121 = por %p119, %p120
    %p122 = scmp.ne.s32.totalorder %s111, %s114
    %p123 = scmp.eq.s32.totalorder %s14, 5
    %p124 = por %p122, %p123
    %p125 = scmp.ne.s32.totalorder %s114, %s115
    %p126 = scmp.eq.s32.totalorder %s14, 0
    %p127 = por %p125, %p126
    %p128 = scmp.ne.s32.totalorder %s114, %s115
    %p129 = scmp.eq.s32.totalorder %s15, 5
    %p130 = por %p128, %p129
    %p132 = scmp.ne.s32.totalorder %s115, %s131
    %p133 = scmp.eq.s32.totalorder %s15, 0
    %p134 = por %p132, %p133
    %p135 = scmp.le.s32.totalorder 1, %s9
    %p136 = scmp.lt.s32.totalorder %s9, 7
    %p137 = pnand %p135, %p136
    %p138 = pneg %p137
    // Predicated region
    $region9: #{_conv_bn_act.1} parent=5 // pred_check
      _
    $region10: #{_conv_bn_act.1} parent=5 // pred_check_branch
      %140 = sbr.rel (%p137) target = $region12
    $region11: #{_conv_bn_act.1} parent=5 // pred_region
      %s141 = ssub.s32 %s9, 1
      // Predicated region
      $region13: #{_conv_bn_act.1} parent=11 // pred_check
        %p142 = pneg %p73
      $region14: #{_conv_bn_act.1} parent=11 // pred_check_branch
        %144 = sbr.rel (%p142) target = $region16
      $region15: #{_conv_bn_act.1} parent=11 // pred_region
        %p145 = scmp.lt.s32.totalorder %s19, 0
        %s146 = scalar_select %p145, %s19, 0
        %s147 = smul.addr %s146, 4
        %s148 = scalar_lea.vmem %s1, %s147
      $region16: #{_conv_bn_act.1} parent=11 // pred_fallthru
        _
      // Predicated region
      $region17: #{_conv_bn_act.1} parent=11 // pred_check
        %p149 = pneg %p99
      $region18: #{_conv_bn_act.1} parent=11 // pred_check_branch
        %151 = sbr.rel (%p149) target = $region20
      $region19: #{_conv_bn_act.1} parent=11 // pred_region
        %p152 = scmp.lt.s32.totalorder %s19, 0
        %s153 = scalar_select %p152, %s19, 0
        %s154 = scalar_lea.vmem %s2, %s153
      $region20: #{_conv_bn_act.1} parent=11 // pred_fallthru
        _
    $region12: #{_conv_bn_act.1} parent=5 // pred_fallthru
      _
    %p155 = scmp.lt.s32.totalorder %s9, 6
    // Predicated region
    $region21: #{_conv_bn_act.1} parent=5 // pred_check
      %p156 = pneg %p155
    $region22: #{_conv_bn_act.1} parent=5 // pred_check_branch
      %158 = sbr.rel (%p156) target = $region24
    $region23: #{_conv_bn_act.1} parent=5 // pred_region
      // Predicated region
      $region25: #{_conv_bn_act.1} parent=23 // pred_check
        %p159 = pneg %p41
      $region26: #{_conv_bn_act.1} parent=23 // pred_check_branch
        %161 = sbr.rel (%p159) target = $region28
      $region27: #{_conv_bn_act.1} parent=23 // pred_region
        %s162 = smul.u32 64, %s16
        %p163 = scmp.lt.s32.totalorder %s162, 383
        %s164 = scalar_select %p163, %s162, 383
        %s165 = smul.addr %s164, 4
        %s166 = scalar_lea.vmem %s0, %s165
        %s167 = smul.u32 64, %s16
      $region28: #{_conv_bn_act.1} parent=23 // pred_fallthru
        _
    $region24: #{_conv_bn_act.1} parent=5 // pred_fallthru
      _
    %p168 = scmp.le.s32.totalorder 1, %s9
    %p169 = scmp.lt.s32.totalorder %s9, 7
    %p170 = pnand %p168, %p169
    %p171 = pneg %p170
    // Predicated region
    $region29: #{_conv_bn_act.1} parent=5 // pred_check
      _
    $region30: #{_conv_bn_act.1} parent=5 // pred_check_branch
      %173 = sbr.rel (%p170) target = $region32
    $region31: #{_conv_bn_act.1} parent=5 // pred_region
      %s174 = ssub.s32 %s9, 1
      %s175 = smul.u32 64, %s18
      %p176 = scmp.lt.s32.totalorder %s175, 383
      %s177 = scalar_select %p176, %s175, 383
      %s178 = smul.addr %s177, 4
      %s179 = scalar_lea.vmem %s0, %s178
      %p180 = pneg %p47
      %p181 = pneg %p44
      %p182 = scmp.lt.s32.totalorder %s19, 0
      %s183 = scalar_select %p182, %s19, 0
      %s184 = smul.addr %s183, 4
      %s185 = scalar_lea.vmem %s1, %s184
      %p186 = pneg %p73
      %p187 = pneg %p70
      %p188 = scmp.lt.s32.totalorder %s19, 0
      %s189 = scalar_select %p188, %s19, 0
      %s190 = scalar_lea.vmem %s2, %s189
      %p191 = pneg %p99
      %p192 = pneg %p96
      %p193 = pneg %p127
      %p194 = pneg %p124
      %s195 = smul.u32 64, %s18
      %p196 = scmp.lt.s32.totalorder %s195, 383
      %s197 = scalar_select %p196, %s195, 383
      %p198 = scmp.lt.s32.totalorder %s19, 0
      %s199 = scalar_select %p198, %s19, 0
      %s200 = sadd.s32 %s199, %s197
      %s201 = smul.addr %s200, 4
      %s202 = scalar_lea.vmem %s3, %s201
      %s203 = smul.u32 64, %s18
      %p204 = scmp.lt.s32.totalorder %s203, 383
      %s205 = scalar_select %p204, %s203, 383
      %s206 = smul.addr %s205, 4
      %s207 = scalar_lea.vmem %s0, %s206
      %s208 = smul.u32 64, %s18
      %p209 = scmp.lt.s32.totalorder %s19, 0
      %s210 = scalar_select %p209, %s19, 0
      %s211 = smul.addr %s210, 4
      %s212 = scalar_lea.vmem %s1, %s211
      %p213 = scmp.lt.s32.totalorder %s19, 0
      %s214 = scalar_select %p213, %s19, 0
      %s215 = scalar_lea.vmem %s2, %s214
      %s216 = smul.u32 64, %s18
      %p217 = scmp.lt.s32.totalorder %s216, 383
      %s218 = scalar_select %p217, %s216, 383
      %p219 = scmp.lt.s32.totalorder %s19, 0
      %s220 = scalar_select %p219, %s19, 0
      %s221 = sadd.s32 %s220, %s218
      %s222 = smul.addr %s221, 4
      %s223 = scalar_lea.vmem %s3, %s222
      %s224 = smul.u32 64, %s18
      %v225 = vld [vmem:[%s207] sm:$0xf]
      %v226 = vld [vmem:[%s207 + $0x4] sm:$0xf]
      %v227 = vld [vmem:[%s207 + $0x8] sm:$0xf]
      %v228 = vld [vmem:[%s207 + $0xc] sm:$0xf]
      %v229 = vld [vmem:[%s207 + $0x10] sm:$0xf]
      %v230 = vld [vmem:[%s207 + $0x14] sm:$0xf]
      %v231 = vld [vmem:[%s207 + $0x18] sm:$0xf]
      %v232 = vld [vmem:[%s207 + $0x1c] sm:$0xf]
      %v233 = vld [vmem:[%s207 + $0x20] sm:$0xf]
      %v234 = vld [vmem:[%s207 + $0x24] sm:$0xf]
      %v235 = vld [vmem:[%s207 + $0x28] sm:$0xf]
      %v236 = vld [vmem:[%s207 + $0x2c] sm:$0xf]
      %v237 = vld [vmem:[%s207 + $0x30] sm:$0xf]
      %v238 = vld [vmem:[%s207 + $0x34] sm:$0xf]
      %v239 = vld [vmem:[%s207 + $0x38] sm:$0xf]
      %v240 = vld [vmem:[%s207 + $0x3c] sm:$0xf]
      %v241 = vld [vmem:[%s207 + $0x40] sm:$0xf]
      %v242 = vld [vmem:[%s207 + $0x44] sm:$0xf]
      %v243 = vld [vmem:[%s207 + $0x48] sm:$0xf]
      %v244 = vld [vmem:[%s207 + $0x4c] sm:$0xf]
      %v245 = vld [vmem:[%s207 + $0x50] sm:$0xf]
      %v246 = vld [vmem:[%s207 + $0x54] sm:$0xf]
      %v247 = vld [vmem:[%s207 + $0x58] sm:$0xf]
      %v248 = vld [vmem:[%s207 + $0x5c] sm:$0xf]
      %v249 = vld [vmem:[%s207 + $0x60] sm:$0xf]
      %v250 = vld [vmem:[%s207 + $0x64] sm:$0xf]
      %v251 = vld [vmem:[%s207 + $0x68] sm:$0xf]
      %v252 = vld [vmem:[%s207 + $0x6c] sm:$0xf]
      %v253 = vld [vmem:[%s207 + $0x70] sm:$0xf]
      %v254 = vld [vmem:[%s207 + $0x74] sm:$0xf]
      %v255 = vld [vmem:[%s207 + $0x78] sm:$0xf]
      %v256 = vld [vmem:[%s207 + $0x7c] sm:$0xf]
      %v257 = vld [vmem:[%s207 + $0x80] sm:$0xf]
      %v258 = vld [vmem:[%s207 + $0x84] sm:$0xf]
      %v259 = vld [vmem:[%s207 + $0x88] sm:$0xf]
      %v260 = vld [vmem:[%s207 + $0x8c] sm:$0xf]
      %v261 = vld [vmem:[%s207 + $0x90] sm:$0xf]
      %v262 = vld [vmem:[%s207 + $0x94] sm:$0xf]
      %v263 = vld [vmem:[%s207 + $0x98] sm:$0xf]
      %v264 = vld [vmem:[%s207 + $0x9c] sm:$0xf]
      %v265 = vld [vmem:[%s207 + $0xa0] sm:$0xf]
      %v266 = vld [vmem:[%s207 + $0xa4] sm:$0xf]
      %v267 = vld [vmem:[%s207 + $0xa8] sm:$0xf]
      %v268 = vld [vmem:[%s207 + $0xac] sm:$0xf]
      %v269 = vld [vmem:[%s207 + $0xb0] sm:$0xf]
      %v270 = vld [vmem:[%s207 + $0xb4] sm:$0xf]
      %v271 = vld [vmem:[%s207 + $0xb8] sm:$0xf]
      %v272 = vld [vmem:[%s207 + $0xbc] sm:$0xf]
      %v273 = vld [vmem:[%s207 + $0xc0] sm:$0xf]
      %v274 = vld [vmem:[%s207 + $0xc4] sm:$0xf]
      %v275 = vld [vmem:[%s207 + $0xc8] sm:$0xf]
      %v276 = vld [vmem:[%s207 + $0xcc] sm:$0xf]
      %v277 = vld [vmem:[%s207 + $0xd0] sm:$0xf]
      %v278 = vld [vmem:[%s207 + $0xd4] sm:$0xf]
      %v279 = vld [vmem:[%s207 + $0xd8] sm:$0xf]
      %v280 = vld [vmem:[%s207 + $0xdc] sm:$0xf]
      %v281 = vld [vmem:[%s207 + $0xe0] sm:$0xf]
      %v282 = vld [vmem:[%s207 + $0xe4] sm:$0xf]
      %v283 = vld [vmem:[%s207 + $0xe8] sm:$0xf]
      %v284 = vld [vmem:[%s207 + $0xec] sm:$0xf]
      %v285 = vld [vmem:[%s207 + $0xf0] sm:$0xf]
      %v286 = vld [vmem:[%s207 + $0xf4] sm:$0xf]
      %v287 = vld [vmem:[%s207 + $0xf8] sm:$0xf]
      %v288 = vld [vmem:[%s207 + $0xfc] sm:$0xf]
      %v289 = vld [vmem:[%s212] sm:$0xf]
      %v290 = vld [vmem:[%s212 + $0x4] sm:$0xf]
      %v291 = vld [vmem:[%s212 + $0x8] sm:$0xf]
      %v292 = vld [vmem:[%s212 + $0xc] sm:$0xf]
      %v293 = vld [vmem:[%s212 + $0x10] sm:$0xf]
      %v294 = vld [vmem:[%s212 + $0x14] sm:$0xf]
      %v295 = vld [vmem:[%s212 + $0x18] sm:$0xf]
      %v296 = vld [vmem:[%s212 + $0x1c] sm:$0xf]
      %v297 = vld [vmem:[%s212 + $0x20] sm:$0xf]
      %v298 = vld [vmem:[%s212 + $0x24] sm:$0xf]
      %v299 = vld [vmem:[%s212 + $0x28] sm:$0xf]
      %v300 = vld [vmem:[%s212 + $0x2c] sm:$0xf]
      %v301 = vld [vmem:[%s212 + $0x30] sm:$0xf]
      %v302 = vld [vmem:[%s212 + $0x34] sm:$0xf]
      %v303 = vld [vmem:[%s212 + $0x38] sm:$0xf]
      %v304 = vld [vmem:[%s212 + $0x3c] sm:$0xf]
      %v305 = vld [vmem:[%s215] sm:$0x1]
      %v307 = vperm.slane %v305, 0
      %v373 = vunpack.c.l.b16 %v225
      %v374 = vunpack.c.l.b16 %v226
      %v375 = vunpack.c.l.b16 %v227
      %v376 = vunpack.c.l.b16 %v228
      %v377 = vunpack.c.l.b16 %v229
      %v378 = vunpack.c.l.b16 %v230
      %v379 = vunpack.c.l.b16 %v231
      %v380 = vunpack.c.l.b16 %v232
      %v381 = vunpack.c.l.b16 %v233
      %v382 = vunpack.c.l.b16 %v234
      %v383 = vunpack.c.l.b16 %v235
      %v384 = vunpack.c.l.b16 %v236
      %v385 = vunpack.c.l.b16 %v237
      %v386 = vunpack.c.l.b16 %v238
      %v387 = vunpack.c.l.b16 %v239
      %v388 = vunpack.c.l.b16 %v240
      %v389 = vunpack.c.l.b16 %v241
      %v390 = vunpack.c.l.b16 %v242
      %v391 = vunpack.c.l.b16 %v243
      %v392 = vunpack.c.l.b16 %v244
      %v393 = vunpack.c.l.b16 %v245
      %v394 = vunpack.c.l.b16 %v246
      %v395 = vunpack.c.l.b16 %v247
      %v396 = vunpack.c.l.b16 %v248
      %v397 = vunpack.c.l.b16 %v249
      %v398 = vunpack.c.l.b16 %v250
      %v399 = vunpack.c.l.b16 %v251
      %v400 = vunpack.c.l.b16 %v252
      %v401 = vunpack.c.l.b16 %v253
      %v402 = vunpack.c.l.b16 %v254
      %v403 = vunpack.c.l.b16 %v255
      %v404 = vunpack.c.l.b16 %v256
      %v405 = vunpack.c.l.b16 %v257
      %v406 = vunpack.c.l.b16 %v258
      %v407 = vunpack.c.l.b16 %v259
      %v408 = vunpack.c.l.b16 %v260
      %v409 = vunpack.c.l.b16 %v261
      %v410 = vunpack.c.l.b16 %v262
      %v411 = vunpack.c.l.b16 %v263
      %v412 = vunpack.c.l.b16 %v264
      %v413 = vunpack.c.l.b16 %v265
      %v414 = vunpack.c.l.b16 %v266
      %v415 = vunpack.c.l.b16 %v267
      %v416 = vunpack.c.l.b16 %v268
      %v417 = vunpack.c.l.b16 %v269
      %v418 = vunpack.c.l.b16 %v270
      %v419 = vunpack.c.l.b16 %v271
      %v420 = vunpack.c.l.b16 %v272
      %v421 = vunpack.c.l.b16 %v273
      %v422 = vunpack.c.l.b16 %v274
      %v423 = vunpack.c.l.b16 %v275
      %v424 = vunpack.c.l.b16 %v276
      %v425 = vunpack.c.l.b16 %v277
      %v426 = vunpack.c.l.b16 %v278
      %v427 = vunpack.c.l.b16 %v279
      %v428 = vunpack.c.l.b16 %v280
      %v429 = vunpack.c.l.b16 %v281
      %v430 = vunpack.c.l.b16 %v282
      %v431 = vunpack.c.l.b16 %v283
      %v432 = vunpack.c.l.b16 %v284
      %v433 = vunpack.c.l.b16 %v285
      %v434 = vunpack.c.l.b16 %v286
      %v435 = vunpack.c.l.b16 %v287
      %v436 = vunpack.c.l.b16 %v288
      %v437 = vpack.c.b16 %v374, %v373
      %v438 = vpack.c.b16 %v376, %v375
      %v439 = vpack.c.b16 %v378, %v377
      %v440 = vpack.c.b16 %v380, %v379
      %v441 = vpack.c.b16 %v382, %v381
      %v442 = vpack.c.b16 %v384, %v383
      %v443 = vpack.c.b16 %v386, %v385
      %v444 = vpack.c.b16 %v388, %v387
      %v445 = vpack.c.b16 %v390, %v389
      %v446 = vpack.c.b16 %v392, %v391
      %v447 = vpack.c.b16 %v394, %v393
      %v448 = vpack.c.b16 %v396, %v395
      %v449 = vpack.c.b16 %v398, %v397
      %v450 = vpack.c.b16 %v400, %v399
      %v451 = vpack.c.b16 %v402, %v401
      %v452 = vpack.c.b16 %v404, %v403
      %v453 = vpack.c.b16 %v406, %v405
      %v454 = vpack.c.b16 %v408, %v407
      %v455 = vpack.c.b16 %v410, %v409
      %v456 = vpack.c.b16 %v412, %v411
      %v457 = vpack.c.b16 %v414, %v413
      %v458 = vpack.c.b16 %v416, %v415
      %v459 = vpack.c.b16 %v418, %v417
      %v460 = vpack.c.b16 %v420, %v419
      %v461 = vpack.c.b16 %v422, %v421
      %v462 = vpack.c.b16 %v424, %v423
      %v463 = vpack.c.b16 %v426, %v425
      %v464 = vpack.c.b16 %v428, %v427
      %v465 = vpack.c.b16 %v430, %v429
      %v466 = vpack.c.b16 %v432, %v431
      %v467 = vpack.c.b16 %v434, %v433
      %v468 = vpack.c.b16 %v436, %v435
      %v517 = vunpack.c.l.b16 %v289
      %v518 = vunpack.c.l.b16 %v290
      %v519 = vunpack.c.l.b16 %v291
      %v520 = vunpack.c.l.b16 %v292
      %v521 = vunpack.c.l.b16 %v293
      %v522 = vunpack.c.l.b16 %v294
      %v523 = vunpack.c.l.b16 %v295
      %v524 = vunpack.c.l.b16 %v296
      %v525 = vunpack.c.l.b16 %v297
      %v526 = vunpack.c.l.b16 %v298
      %v527 = vunpack.c.l.b16 %v299
      %v528 = vunpack.c.l.b16 %v300
      %v529 = vunpack.c.l.b16 %v301
      %v530 = vunpack.c.l.b16 %v302
      %v531 = vunpack.c.l.b16 %v303
      %v532 = vunpack.c.l.b16 %v304
      %v533 = vpack.c.b16 %v518, %v517
      %v534 = vpack.c.b16 %v520, %v519
      %v535 = vpack.c.b16 %v522, %v521
      %v536 = vpack.c.b16 %v524, %v523
      %v537 = vpack.c.b16 %v526, %v525
      %v538 = vpack.c.b16 %v528, %v527
      %v539 = vpack.c.b16 %v530, %v529
      %v540 = vpack.c.b16 %v532, %v531
      %549 = vmatpush.bf16.msra.mxu0 %v540
      %550 = vmatpush.bf16.msra.mxu0 %v539
      %551 = vmatpush.bf16.msra.mxu0 %v538
      %552 = vmatpush.bf16.msra.mxu0 %v537
      %553 = vmatpush.bf16.msra.mxu0 %v536
      %554 = vmatpush.bf16.msra.mxu0 %v535
      %555 = vmatpush.bf16.msra.mxu0 %v534
      %556 = vmatpush.bf16.msra.mxu0 %v533
      %557 = vmatmul.bf16.gmra.mxu0 %v437
      %v558 = vpop.f32.mrf.mxu0
      %v559 = vadd.f32 %v307, %v558
      %v560 = vpop.f32.mrf.mxu0
      %v561 = vadd.f32 %v307, %v560
      %562 = vmatmul.bf16.gmra.mxu0 %v438
      %v563 = vpop.f32.mrf.mxu0
      %v564 = vadd.f32 %v307, %v563
      %v565 = vpop.f32.mrf.mxu0
      %v566 = vadd.f32 %v307, %v565
      %567 = vmatmul.bf16.gmra.mxu0 %v439
      %v568 = vpop.f32.mrf.mxu0
      %v569 = vadd.f32 %v307, %v568
      %v570 = vpop.f32.mrf.mxu0
      %v571 = vadd.f32 %v307, %v570
      %572 = vmatmul.bf16.gmra.mxu0 %v440
      %v573 = vpop.f32.mrf.mxu0
      %v574 = vadd.f32 %v307, %v573
      %v575 = vpop.f32.mrf.mxu0
      %v576 = vadd.f32 %v307, %v575
      %577 = vmatmul.bf16.gmra.mxu0 %v441
      %v578 = vpop.f32.mrf.mxu0
      %v579 = vadd.f32 %v307, %v578
      %v580 = vpop.f32.mrf.mxu0
      %v581 = vadd.f32 %v307, %v580
      %582 = vmatmul.bf16.gmra.mxu0 %v442
      %v583 = vpop.f32.mrf.mxu0
      %v584 = vadd.f32 %v307, %v583
      %v585 = vpop.f32.mrf.mxu0
      %v586 = vadd.f32 %v307, %v585
      %587 = vmatmul.bf16.gmra.mxu0 %v443
      %v588 = vpop.f32.mrf.mxu0
      %v589 = vadd.f32 %v307, %v588
      %v590 = vpop.f32.mrf.mxu0
      %v591 = vadd.f32 %v307, %v590
      %592 = vmatmul.bf16.gmra.mxu0 %v444
      %v593 = vpop.f32.mrf.mxu0
      %v594 = vadd.f32 %v307, %v593
      %v595 = vpop.f32.mrf.mxu0
      %v596 = vadd.f32 %v307, %v595
      %597 = vmatmul.bf16.gmra.mxu0 %v445
      %v598 = vpop.f32.mrf.mxu0
      %v599 = vadd.f32 %v307, %v598
      %v600 = vpop.f32.mrf.mxu0
      %v601 = vadd.f32 %v307, %v600
      %602 = vmatmul.bf16.gmra.mxu0 %v446
      %v603 = vpop.f32.mrf.mxu0
      %v604 = vadd.f32 %v307, %v603
      %v605 = vpop.f32.mrf.mxu0
      %v606 = vadd.f32 %v307, %v605
      %607 = vmatmul.bf16.gmra.mxu0 %v447
      %v608 = vpop.f32.mrf.mxu0
      %v609 = vadd.f32 %v307, %v608
      %v610 = vpop.f32.mrf.mxu0
      %v611 = vadd.f32 %v307, %v610
      %612 = vmatmul.bf16.gmra.mxu0 %v448
      %v613 = vpop.f32.mrf.mxu0
      %v614 = vadd.f32 %v307, %v613
      %v615 = vpop.f32.mrf.mxu0
      %v616 = vadd.f32 %v307, %v615
      %617 = vmatmul.bf16.gmra.mxu0 %v449
      %v618 = vpop.f32.mrf.mxu0
      %v619 = vadd.f32 %v307, %v618
      %v620 = vpop.f32.mrf.mxu0
      %v621 = vadd.f32 %v307, %v620
      %622 = vmatmul.bf16.gmra.mxu0 %v450
      %v623 = vpop.f32.mrf.mxu0
      %v624 = vadd.f32 %v307, %v623
      %v625 = vpop.f32.mrf.mxu0
      %v626 = vadd.f32 %v307, %v625
      %627 = vmatmul.bf16.gmra.mxu0 %v451
      %v628 = vpop.f32.mrf.mxu0
      %v629 = vadd.f32 %v307, %v628
      %v630 = vpop.f32.mrf.mxu0
      %v631 = vadd.f32 %v307, %v630
      %632 = vmatmul.bf16.gmra.mxu0 %v452
      %v633 = vpop.f32.mrf.mxu0
      %v634 = vadd.f32 %v307, %v633
      %v635 = vpop.f32.mrf.mxu0
      %v636 = vadd.f32 %v307, %v635
      %637 = vmatmul.bf16.gmra.mxu0 %v453
      %v638 = vpop.f32.mrf.mxu0
      %v639 = vadd.f32 %v307, %v638
      %v640 = vpop.f32.mrf.mxu0
      %v641 = vadd.f32 %v307, %v640
      %642 = vmatmul.bf16.gmra.mxu0 %v454
      %v643 = vpop.f32.mrf.mxu0
      %v644 = vadd.f32 %v307, %v643
      %v645 = vpop.f32.mrf.mxu0
      %v646 = vadd.f32 %v307, %v645
      %647 = vmatmul.bf16.gmra.mxu0 %v455
      %v648 = vpop.f32.mrf.mxu0
      %v649 = vadd.f32 %v307, %v648
      %v650 = vpop.f32.mrf.mxu0
      %v651 = vadd.f32 %v307, %v650
      %652 = vmatmul.bf16.gmra.mxu0 %v456
      %v653 = vpop.f32.mrf.mxu0
      %v654 = vadd.f32 %v307, %v653
      %v655 = vpop.f32.mrf.mxu0
      %v656 = vadd.f32 %v307, %v655
      %657 = vmatmul.bf16.gmra.mxu0 %v457
      %v658 = vpop.f32.mrf.mxu0
      %v659 = vadd.f32 %v307, %v658
      %v660 = vpop.f32.mrf.mxu0
      %v661 = vadd.f32 %v307, %v660
      %662 = vmatmul.bf16.gmra.mxu0 %v458
      %v663 = vpop.f32.mrf.mxu0
      %v664 = vadd.f32 %v307, %v663
      %v665 = vpop.f32.mrf.mxu0
      %v666 = vadd.f32 %v307, %v665
      %667 = vmatmul.bf16.gmra.mxu0 %v459
      %v668 = vpop.f32.mrf.mxu0
      %v669 = vadd.f32 %v307, %v668
      %v670 = vpop.f32.mrf.mxu0
      %v671 = vadd.f32 %v307, %v670
      %672 = vmatmul.bf16.gmra.mxu0 %v460
      %v673 = vpop.f32.mrf.mxu0
      %v674 = vadd.f32 %v307, %v673
      %v675 = vpop.f32.mrf.mxu0
      %v676 = vadd.f32 %v307, %v675
      %677 = vmatmul.bf16.gmra.mxu0 %v461
      %v678 = vpop.f32.mrf.mxu0
      %v679 = vadd.f32 %v307, %v678
      %v680 = vpop.f32.mrf.mxu0
      %v681 = vadd.f32 %v307, %v680
      %682 = vmatmul.bf16.gmra.mxu0 %v462
      %v683 = vpop.f32.mrf.mxu0
      %v684 = vadd.f32 %v307, %v683
      %v685 = vpop.f32.mrf.mxu0
      %v686 = vadd.f32 %v307, %v685
      %687 = vmatmul.bf16.gmra.mxu0 %v463
      %v688 = vpop.f32.mrf.mxu0
      %v689 = vadd.f32 %v307, %v688
      %v690 = vpop.f32.mrf.mxu0
      %v691 = vadd.f32 %v307, %v690
      %692 = vmatmul.bf16.gmra.mxu0 %v464
      %v693 = vpop.f32.mrf.mxu0
      %v694 = vadd.f32 %v307, %v693
      %v695 = vpop.f32.mrf.mxu0
      %v696 = vadd.f32 %v307, %v695
      %697 = vmatmul.bf16.gmra.mxu0 %v465
      %v698 = vpop.f32.mrf.mxu0
      %v699 = vadd.f32 %v307, %v698
      %v700 = vpop.f32.mrf.mxu0
      %v701 = vadd.f32 %v307, %v700
      %702 = vmatmul.bf16.gmra.mxu0 %v466
      %v703 = vpop.f32.mrf.mxu0
      %v704 = vadd.f32 %v307, %v703
      %v705 = vpop.f32.mrf.mxu0
      %v706 = vadd.f32 %v307, %v705
      %707 = vmatmul.bf16.gmra.mxu0 %v467
      %v708 = vpop.f32.mrf.mxu0
      %v709 = vadd.f32 %v307, %v708
      %v710 = vpop.f32.mrf.mxu0
      %v711 = vadd.f32 %v307, %v710
      %712 = vmatmul.bf16.gmra.mxu0 %v468
      %v713 = vpop.f32.mrf.mxu0
      %v714 = vadd.f32 %v307, %v713
      %v715 = vpop.f32.mrf.mxu0
      %v716 = vadd.f32 %v307, %v715
      %717 = vdwg.mxu0
      %v718 = vmax.f32 %v559, 0.0
      %v719 = vmax.f32 %v561, 0.0
      %v720 = vmax.f32 %v564, 0.0
      %v721 = vmax.f32 %v566, 0.0
      %v722 = vmax.f32 %v569, 0.0
      %v723 = vmax.f32 %v571, 0.0
      %v724 = vmax.f32 %v574, 0.0
      %v725 = vmax.f32 %v576, 0.0
      %v726 = vmax.f32 %v579, 0.0
      %v727 = vmax.f32 %v581, 0.0
      %v728 = vmax.f32 %v584, 0.0
      %v729 = vmax.f32 %v586, 0.0
      %v730 = vmax.f32 %v589, 0.0
      %v731 = vmax.f32 %v591, 0.0
      %v732 = vmax.f32 %v594, 0.0
      %v733 = vmax.f32 %v596, 0.0
      %v734 = vmax.f32 %v599, 0.0
      %v735 = vmax.f32 %v601, 0.0
      %v736 = vmax.f32 %v604, 0.0
      %v737 = vmax.f32 %v606, 0.0
      %v738 = vmax.f32 %v609, 0.0
      %v739 = vmax.f32 %v611, 0.0
      %v740 = vmax.f32 %v614, 0.0
      %v741 = vmax.f32 %v616, 0.0
      %v742 = vmax.f32 %v619, 0.0
      %v743 = vmax.f32 %v621, 0.0
      %v744 = vmax.f32 %v624, 0.0
      %v745 = vmax.f32 %v626, 0.0
      %v746 = vmax.f32 %v629, 0.0
      %v747 = vmax.f32 %v631, 0.0
      %v748 = vmax.f32 %v634, 0.0
      %v749 = vmax.f32 %v636, 0.0
      %v750 = vmax.f32 %v639, 0.0
      %v751 = vmax.f32 %v641, 0.0
      %v752 = vmax.f32 %v644, 0.0
      %v753 = vmax.f32 %v646, 0.0
      %v754 = vmax.f32 %v649, 0.0
      %v755 = vmax.f32 %v651, 0.0
      %v756 = vmax.f32 %v654, 0.0
      %v757 = vmax.f32 %v656, 0.0
      %v758 = vmax.f32 %v659, 0.0
      %v759 = vmax.f32 %v661, 0.0
      %v760 = vmax.f32 %v664, 0.0
      %v761 = vmax.f32 %v666, 0.0
      %v762 = vmax.f32 %v669, 0.0
      %v763 = vmax.f32 %v671, 0.0
      %v764 = vmax.f32 %v674, 0.0
      %v765 = vmax.f32 %v676, 0.0
      %v766 = vmax.f32 %v679, 0.0
      %v767 = vmax.f32 %v681, 0.0
      %v768 = vmax.f32 %v684, 0.0
      %v769 = vmax.f32 %v686, 0.0
      %v770 = vmax.f32 %v689, 0.0
      %v771 = vmax.f32 %v691, 0.0
      %v772 = vmax.f32 %v694, 0.0
      %v773 = vmax.f32 %v696, 0.0
      %v774 = vmax.f32 %v699, 0.0
      %v775 = vmax.f32 %v701, 0.0
      %v776 = vmax.f32 %v704, 0.0
      %v777 = vmax.f32 %v706, 0.0
      %v778 = vmax.f32 %v709, 0.0
      %v779 = vmax.f32 %v711, 0.0
      %v780 = vmax.f32 %v714, 0.0
      %v781 = vmax.f32 %v716, 0.0
      %v782 = vpack.c.bf16 %v718, %v718
      %v783 = vpack.c.bf16 %v719, %v719
      %v784 = vpack.c.bf16 %v720, %v720
      %v785 = vpack.c.bf16 %v721, %v721
      %v786 = vpack.c.bf16 %v722, %v722
      %v787 = vpack.c.bf16 %v723, %v723
      %v788 = vpack.c.bf16 %v724, %v724
      %v789 = vpack.c.bf16 %v725, %v725
      %v790 = vpack.c.bf16 %v726, %v726
      %v791 = vpack.c.bf16 %v727, %v727
      %v792 = vpack.c.bf16 %v728, %v728
      %v793 = vpack.c.bf16 %v729, %v729
      %v794 = vpack.c.bf16 %v730, %v730
      %v795 = vpack.c.bf16 %v731, %v731
      %v796 = vpack.c.bf16 %v732, %v732
      %v797 = vpack.c.bf16 %v733, %v733
      %v798 = vpack.c.bf16 %v734, %v734
      %v799 = vpack.c.bf16 %v735, %v735
      %v800 = vpack.c.bf16 %v736, %v736
      %v801 = vpack.c.bf16 %v737, %v737
      %v802 = vpack.c.bf16 %v738, %v738
      %v803 = vpack.c.bf16 %v739, %v739
      %v804 = vpack.c.bf16 %v740, %v740
      %v805 = vpack.c.bf16 %v741, %v741
      %v806 = vpack.c.bf16 %v742, %v742
      %v807 = vpack.c.bf16 %v743, %v743
      %v808 = vpack.c.bf16 %v744, %v744
      %v809 = vpack.c.bf16 %v745, %v745
      %v810 = vpack.c.bf16 %v746, %v746
      %v811 = vpack.c.bf16 %v747, %v747
      %v812 = vpack.c.bf16 %v748, %v748
      %v813 = vpack.c.bf16 %v749, %v749
      %v814 = vpack.c.bf16 %v750, %v750
      %v815 = vpack.c.bf16 %v751, %v751
      %v816 = vpack.c.bf16 %v752, %v752
      %v817 = vpack.c.bf16 %v753, %v753
      %v818 = vpack.c.bf16 %v754, %v754
      %v819 = vpack.c.bf16 %v755, %v755
      %v820 = vpack.c.bf16 %v756, %v756
      %v821 = vpack.c.bf16 %v757, %v757
      %v822 = vpack.c.bf16 %v758, %v758
      %v823 = vpack.c.bf16 %v759, %v759
      %v824 = vpack.c.bf16 %v760, %v760
      %v825 = vpack.c.bf16 %v761, %v761
      %v826 = vpack.c.bf16 %v762, %v762
      %v827 = vpack.c.bf16 %v763, %v763
      %v828 = vpack.c.bf16 %v764, %v764
      %v829 = vpack.c.bf16 %v765, %v765
      %v830 = vpack.c.bf16 %v766, %v766
      %v831 = vpack.c.bf16 %v767, %v767
      %v832 = vpack.c.bf16 %v768, %v768
      %v833 = vpack.c.bf16 %v769, %v769
      %v834 = vpack.c.bf16 %v770, %v770
      %v835 = vpack.c.bf16 %v771, %v771
      %v836 = vpack.c.bf16 %v772, %v772
      %v837 = vpack.c.bf16 %v773, %v773
      %v838 = vpack.c.bf16 %v774, %v774
      %v839 = vpack.c.bf16 %v775, %v775
      %v840 = vpack.c.bf16 %v776, %v776
      %v841 = vpack.c.bf16 %v777, %v777
      %v842 = vpack.c.bf16 %v778, %v778
      %v843 = vpack.c.bf16 %v779, %v779
      %v844 = vpack.c.bf16 %v780, %v780
      %v845 = vpack.c.bf16 %v781, %v781
      %846 = vst [vmem:[%s223] sm:$0xf] %v782
      %847 = vst [vmem:[%s223 + $0x4] sm:$0xf] %v783
      %848 = vst [vmem:[%s223 + $0x8] sm:$0xf] %v784
      %849 = vst [vmem:[%s223 + $0xc] sm:$0xf] %v785
      %850 = vst [vmem:[%s223 + $0x10] sm:$0xf] %v786
      %851 = vst [vmem:[%s223 + $0x14] sm:$0xf] %v787
      %852 = vst [vmem:[%s223 + $0x18] sm:$0xf] %v788
      %853 = vst [vmem:[%s223 + $0x1c] sm:$0xf] %v789
      %854 = vst [vmem:[%s223 + $0x20] sm:$0xf] %v790
      %855 = vst [vmem:[%s223 + $0x24] sm:$0xf] %v791
      %856 = vst [vmem:[%s223 + $0x28] sm:$0xf] %v792
      %857 = vst [vmem:[%s223 + $0x2c] sm:$0xf] %v793
      %858 = vst [vmem:[%s223 + $0x30] sm:$0xf] %v794
      %859 = vst [vmem:[%s223 + $0x34] sm:$0xf] %v795
      %860 = vst [vmem:[%s223 + $0x38] sm:$0xf] %v796
      %861 = vst [vmem:[%s223 + $0x3c] sm:$0xf] %v797
      %862 = vst [vmem:[%s223 + $0x40] sm:$0xf] %v798
      %863 = vst [vmem:[%s223 + $0x44] sm:$0xf] %v799
      %864 = vst [vmem:[%s223 + $0x48] sm:$0xf] %v800
      %865 = vst [vmem:[%s223 + $0x4c] sm:$0xf] %v801
      %866 = vst [vmem:[%s223 + $0x50] sm:$0xf] %v802
      %867 = vst [vmem:[%s223 + $0x54] sm:$0xf] %v803
      %868 = vst [vmem:[%s223 + $0x58] sm:$0xf] %v804
      %869 = vst [vmem:[%s223 + $0x5c] sm:$0xf] %v805
      %870 = vst [vmem:[%s223 + $0x60] sm:$0xf] %v806
      %871 = vst [vmem:[%s223 + $0x64] sm:$0xf] %v807
      %872 = vst [vmem:[%s223 + $0x68] sm:$0xf] %v808
      %873 = vst [vmem:[%s223 + $0x6c] sm:$0xf] %v809
      %874 = vst [vmem:[%s223 + $0x70] sm:$0xf] %v810
      %875 = vst [vmem:[%s223 + $0x74] sm:$0xf] %v811
      %876 = vst [vmem:[%s223 + $0x78] sm:$0xf] %v812
      %877 = vst [vmem:[%s223 + $0x7c] sm:$0xf] %v813
      %878 = vst [vmem:[%s223 + $0x80] sm:$0xf] %v814
      %879 = vst [vmem:[%s223 + $0x84] sm:$0xf] %v815
      %880 = vst [vmem:[%s223 + $0x88] sm:$0xf] %v816
      %881 = vst [vmem:[%s223 + $0x8c] sm:$0xf] %v817
      %882 = vst [vmem:[%s223 + $0x90] sm:$0xf] %v818
      %883 = vst [vmem:[%s223 + $0x94] sm:$0xf] %v819
      %884 = vst [vmem:[%s223 + $0x98] sm:$0xf] %v820
      %885 = vst [vmem:[%s223 + $0x9c] sm:$0xf] %v821
      %886 = vst [vmem:[%s223 + $0xa0] sm:$0xf] %v822
      %887 = vst [vmem:[%s223 + $0xa4] sm:$0xf] %v823
      %888 = vst [vmem:[%s223 + $0xa8] sm:$0xf] %v824
      %889 = vst [vmem:[%s223 + $0xac] sm:$0xf] %v825
      %890 = vst [vmem:[%s223 + $0xb0] sm:$0xf] %v826
      %891 = vst [vmem:[%s223 + $0xb4] sm:$0xf] %v827
      %892 = vst [vmem:[%s223 + $0xb8] sm:$0xf] %v828
      %893 = vst [vmem:[%s223 + $0xbc] sm:$0xf] %v829
      %894 = vst [vmem:[%s223 + $0xc0] sm:$0xf] %v830
      %895 = vst [vmem:[%s223 + $0xc4] sm:$0xf] %v831
      %896 = vst [vmem:[%s223 + $0xc8] sm:$0xf] %v832
      %897 = vst [vmem:[%s223 + $0xcc] sm:$0xf] %v833
      %898 = vst [vmem:[%s223 + $0xd0] sm:$0xf] %v834
      %899 = vst [vmem:[%s223 + $0xd4] sm:$0xf] %v835
      %900 = vst [vmem:[%s223 + $0xd8] sm:$0xf] %v836
      %901 = vst [vmem:[%s223 + $0xdc] sm:$0xf] %v837
      %902 = vst [vmem:[%s223 + $0xe0] sm:$0xf] %v838
      %903 = vst [vmem:[%s223 + $0xe4] sm:$0xf] %v839
      %904 = vst [vmem:[%s223 + $0xe8] sm:$0xf] %v840
      %905 = vst [vmem:[%s223 + $0xec] sm:$0xf] %v841
      %906 = vst [vmem:[%s223 + $0xf0] sm:$0xf] %v842
      %907 = vst [vmem:[%s223 + $0xf4] sm:$0xf] %v843
      %908 = vst [vmem:[%s223 + $0xf8] sm:$0xf] %v844
      %909 = vst [vmem:[%s223 + $0xfc] sm:$0xf] %v845
      %s910 = smul.u32 64, %s18
      %p911 = scmp.lt.s32.totalorder %s910, 383
      %s912 = scalar_select %p911, %s910, 383
      %p913 = scmp.lt.s32.totalorder %s19, 0
      %s914 = scalar_select %p913, %s19, 0
      %s915 = sadd.s32 %s914, %s912
      %s916 = smul.addr %s915, 4
      %s917 = scalar_lea.vmem %s3, %s916
      // Predicated region
      $region33: #{_conv_bn_act.1} parent=31 // pred_check
        %p918 = pneg %p124
      $region34: #{_conv_bn_act.1} parent=31 // pred_check_branch
        %920 = sbr.rel (%p918) target = $region36
      $region35: #{_conv_bn_act.1} parent=31 // pred_region
        %s921 = smul.u32 64, %s18
      $region36: #{_conv_bn_act.1} parent=31 // pred_fallthru
        _
    $region32: #{_conv_bn_act.1} parent=5 // pred_fallthru
      _
    %p922 = scmp.le.s32.totalorder 2, %s9
    // Predicated region
    $region37: #{_conv_bn_act.1} parent=5 // pred_check
      %p923 = pneg %p922
    $region38: #{_conv_bn_act.1} parent=5 // pred_check_branch
      %925 = sbr.rel (%p923) target = $region40
    $region39: #{_conv_bn_act.1} parent=5 // pred_region
      %s926 = ssub.s32 %s9, 2
      // Predicated region
      $region41: #{_conv_bn_act.1} parent=39 // pred_check
        %p927 = pneg %p130
      $region42: #{_conv_bn_act.1} parent=39 // pred_check_branch
        %929 = sbr.rel (%p927) target = $region44
      $region43: #{_conv_bn_act.1} parent=39 // pred_region
        %s930 = smul.u32 64, %s20
        %p931 = scmp.lt.s32.totalorder %s930, 383
        %s932 = scalar_select %p931, %s930, 383
        %p933 = scmp.lt.s32.totalorder %s21, 0
        %s934 = scalar_select %p933, %s21, 0
        %s935 = sadd.s32 %s934, %s932
        %s936 = smul.addr %s935, 4
        %s937 = scalar_lea.vmem %s3, %s936
      $region44: #{_conv_bn_act.1} parent=39 // pred_fallthru
        _
    $region40: #{_conv_bn_act.1} parent=5 // pred_fallthru
      _
  $region6: #{_conv_bn_act.1} parent=0 // loop_footer
    %s13 = sadd.s32 1, %s9
  $region7: #{_conv_bn_act.1} parent=0 // loop_footer_branch
    %8 = sbr.rel target = $region3
  $region8: #{_conv_bn_act.1} parent=0 // loop_exit
    _

</llo_original>
